<compile_context>
chip_gen: v7x
topology: tpu7x:2x2x1
jax: 0.10.0
libtpu: 0.0.40
codegen_flags: <defaults>
</compile_context>

<pallas_src>
import jax
import jax.numpy as jnp
from jax.experimental import pallas as pl
from jax.experimental.pallas import tpu as pltpu

_MIB = 1024 * 1024


def _round_up(a, b):
    return (a + b - 1) // b * b


def _cdiv(a, b):
    return (a + b - 1) // b


def _balanced_tile(size, target, align):
    """Tile <= ~target chosen so ragged padding stays under one `align` chunk."""
    n_tiles = max(1, _cdiv(size, target))
    return _round_up(_cdiv(size, n_tiles), align)


def _vmem_info():
    try:
        phys = int(pltpu.get_tpu_info().vmem_capacity_bytes)
    except Exception:  # pragma: no cover - conservative fallback
        phys = 64 * _MIB
    # Leave headroom for Mosaic internal scratch / semaphores:
    #   v7x (64 MiB / TC) -> 48 MiB,  v5e/v6e (128 MiB) -> 96 MiB.
    limit = min(phys * 3 // 4, 96 * _MIB)
    return phys, limit


def _choose_fused_tk(k, group_size, max_tk):
    """K-tile for the fused path: d*group_size with d | (K//g), satisfying the
    TPU (8,128) block constraints for both the (tm, tk) x block and the
    (d, tn) scale block, preferring the largest tk <= max_tk."""
    gc = k // group_size
    valid = []
    for d in range(1, gc + 1):
        if gc % d:
            continue
        tk = d * group_size
        ok_scales = (d == gc) or (d % 8 == 0)
        ok_k = (tk == k) or (tk % 128 == 0)
        if ok_scales and ok_k:
            valid.append(tk)
    if not valid:
        return k
    under = [t for t in valid if t <= max_tk]
    return max(under) if under else min(valid)


# ---------------------------------------------------------------------------
# Kernels
# ---------------------------------------------------------------------------
def _wq_linear_cached_kernel(x_ref, q_ref, s_ref, z_ref, o_ref, w_ref):
    """Grid = (N tiles, M tiles), M innermost.

    x_ref: (tm, K) bf16   q_ref: (K, tn) u8   s_ref/z_ref: (K//g, tn) f32
    w_ref: (K, tn) bf16 VMEM scratch -- dequantized weights, filled once per
           N tile (first M step) and reused across the whole M sweep.
    """
    @pl.when(pl.program_id(1) == 0)
    def _dequant():
        k, tn = q_ref.shape
        gc = s_ref.shape[0]
        gsz = k // gc
        # K-major: splitting K into (groups, group_size) keeps N on the lane
        # axis, so the group broadcast is lane-dense and relayout-free.
        q = q_ref[...].astype(jnp.float32).reshape(gc, gsz, tn)
        w = q * s_ref[...][:, None, :] + z_ref[...][:, None, :]
        # TODO(synk): on v6e/v7x the dequant math could run in native bf16
        # (halves VALU work and scratch stores); kept f32 for v5e + exactness.
        w_ref[...] = w.reshape(k, tn).astype(jnp.bfloat16)

    # Canonical (tm, K) @ (K, tn) MXU contraction, f32 accumulation.
    o_ref[...] = jnp.dot(x_ref[...], w_ref[...],
                         preferred_element_type=jnp.float32)


def _wq_linear_fused_kernel(x_ref, q_ref, s_ref, z_ref, o_ref, acc_ref):
    """Grid = (N tiles, K tiles). Single M tile: dequant fused per K chunk,
    no weight scratch (it would give zero reuse for decode shapes)."""
    kk = pl.program_id(1)

    @pl.when(kk == 0)
    def _init():
        acc_ref[...] = jnp.zeros_like(acc_ref)

    tk, tn = q_ref.shape
    gpt = s_ref.shape[0]
    gsz = tk // gpt
    q = q_ref[...].astype(jnp.float32).reshape(gpt, gsz, tn)
    w = (q * s_ref[...][:, None, :] + z_ref[...][:, None, :]).reshape(tk, tn)
    acc_ref[...] += jnp.dot(x_ref[...], w.astype(jnp.bfloat16),
                            preferred_element_type=jnp.float32)

    @pl.when(kk == pl.num_programs(1) - 1)
    def _store():
        o_ref[...] = acc_ref[...]


# ---------------------------------------------------------------------------
# Wrapper
# ---------------------------------------------------------------------------
def uintx_weight_only_linear(x, qvals_km, scales_km, weight_zeros_km,
                             group_size, *, tm=256, tn=None):
    """Forward pass of UIntxWeightOnlyQuantizedLinear (K-major packed weights).

    x:                (..., K) float
    qvals_km:         (K, N)    uint8 unsigned nbit codes (K-major)
    scales_km:        (K//g, N) float per-group scales
    weight_zeros_km:  (K//g, N) float (already -zp * scale)
    returns:          (..., N) float32
    """
    assert x.ndim >= 2
    lead = x.shape[:-1]
    k = x.shape[-1]
    kq, n = qvals_km.shape
    assert kq == k and k % group_size == 0
    gc = k // group_size
    assert scales_km.shape == (gc, n)
    assert weight_zeros_km.shape == (gc, n)

    x2 = x.reshape(-1, k).astype(jnp.bfloat16)   # bf16 feed for the MXU
    m = x2.shape[0]

    phys_vmem, vmem_limit = _vmem_info()
    budget = int(vmem_limit * 0.8)

    if tn is None:
        # Larger tn cuts x HBM re-reads (x-stream intensity ~ tn FLOP/byte);
        # only worth the extra VMEM when there are many M tiles.
        tn = (512 if vmem_limit >= 80 * _MIB else 384) if m > 4 * tm else 256

    # Balanced ragged tiling (e.g. m=272 -> 2 tiles of 144, not 256+240 pad).
    tm_eff = _balanced_tile(m, tm, 16)
    tn_eff = _balanced_tile(n, tn, 128)

    # v7x megacore balance: the 'parallel' N axis shards across 2 TensorCores,
    # so prefer >= 2 N tiles there (no-op on single-TC v5e/v6e).
    if phys_vmem <= 64 * _MIB and n >= 256 and _round_up(n, tn_eff) // tn_eff < 2:
        tn_eff = _round_up(_cdiv(n, 2), 128)

    # VMEM footprint guard (scales with K): shrink tm first (halves the x
    # buffers with no extra HBM traffic); only touch tn as a last resort.
    def _cached_footprint(tm_b, tn_b):
        return (2 * tm_b * k * 2          # x bf16 double buffer
                + 2 * k * tn_b            # q u8 double buffer
                + 2 * 2 * gc * tn_b * 4   # scales + zeros f32 double buffers
                + k * tn_b * 2            # dequant scratch (bf16)
                + k * tn_b * 4            # f32 dequant temporary
                + 2 * tm_b * tn_b * 4)    # f32 out double buffer

    while _cached_footprint(tm_eff, tn_eff) > budget and tm_eff > 16:
        tm_eff = _round_up(max(16, tm_eff // 2), 16)
    while _cached_footprint(tm_eff, tn_eff) > budget and tn_eff > 128:
        tn_eff = _round_up(max(128, tn_eff // 2), 128)

    m_pad = _round_up(m, tm_eff)
    n_pad = _round_up(n, tn_eff)

    if m_pad != m:
        x2 = jnp.pad(x2, ((0, m_pad - m), (0, 0)))
    q_p = qvals_km
    s_p = scales_km.astype(jnp.float32)
    z_p = weight_zeros_km.astype(jnp.float32)
    if n_pad != n:
        # Padded N columns must stay zero in q/s/z so the sliced-off padded
        # output columns are exactly zero.
        q_p = jnp.pad(q_p, ((0, 0), (0, n_pad - n)))
        s_p = jnp.pad(s_p, ((0, 0), (0, n_pad - n)))
        z_p = jnp.pad(z_p, ((0, 0), (0, n_pad - n)))

    n_tiles = n_pad // tn_eff
    m_tiles = m_pad // tm_eff

    cost = pl.CostEstimate(
        flops=2 * m_pad * n_pad * k,
        transcendentals=0,
        bytes_accessed=(n_tiles * m_pad * k * 2     # x is re-read per N tile
                        + n_pad * k                  # qvals (u8), read once
                        + 2 * n_pad * gc * 4         # scales + zeros
                        + m_pad * n_pad * 4),        # output (f32)
    )

    compiler_params = pltpu.CompilerParams(
        dimension_semantics=("parallel", "arbitrary"),
        vmem_limit_bytes=vmem_limit,
    )

    if m_tiles == 1:
        # ---- fused fast path (decode / small batch): no weight scratch ----
        per_tk = 4 * tm_eff + 8 * tn_eff
        fixed = 3 * tm_eff * tn_eff * 4 + 4 * gc * tn_eff * 4
        max_tk = max(group_size, (budget - fixed) // max(1, per_tk))
        tk = _choose_fused_tk(k, group_size, min(k, max_tk))
        gpt = tk // group_size
        out = pl.pallas_call(
            _wq_linear_fused_kernel,
            out_shape=jax.ShapeDtypeStruct((m_pad, n_pad), jnp.float32),
            grid_spec=pltpu.PrefetchScalarGridSpec(
                num_scalar_prefetch=0,
                grid=(n_tiles, k // tk),
                in_specs=[
                    pl.BlockSpec((tm_eff, tk), lambda j, kk: (0, kk)),    # x
                    pl.BlockSpec((tk, tn_eff), lambda j, kk: (kk, j)),    # q u8
                    pl.BlockSpec((gpt, tn_eff), lambda j, kk: (kk, j)),   # scales
                    pl.BlockSpec((gpt, tn_eff), lambda j, kk: (kk, j)),   # zeros
                ],
                out_specs=pl.BlockSpec((tm_eff, tn_eff), lambda j, kk: (0, j)),
                scratch_shapes=[pltpu.VMEM((tm_eff, tn_eff), jnp.float32)],
            ),
            compiler_params=compiler_params,
            cost_estimate=cost,
        )(x2, q_p, s_p, z_p)
    else:
        # ---- cached path: dequantize once per N tile, reuse over the M sweep
        # TODO(synk): double-buffer the dequant scratch and prefetch-dequantize
        # the NEXT N tile during the current tile's last M step (shifted q
        # index_map) to hide the per-N-tile dequant; needs per-core first-tile
        # handling under megacore sharding, so omitted for robustness.
        out = pl.pallas_call(
            _wq_linear_cached_kernel,
            out_shape=jax.ShapeDtypeStruct((m_pad, n_pad), jnp.float32),
            grid_spec=pltpu.PrefetchScalarGridSpec(
                num_scalar_prefetch=0,
                grid=(n_tiles, m_tiles),                  # M innermost
                in_specs=[
                    pl.BlockSpec((tm_eff, k), lambda j, i: (i, 0)),       # x
                    pl.BlockSpec((k, tn_eff), lambda j, i: (0, j)),       # q u8
                    pl.BlockSpec((gc, tn_eff), lambda j, i: (0, j)),      # scales
                    pl.BlockSpec((gc, tn_eff), lambda j, i: (0, j)),      # zeros
                ],
                out_specs=pl.BlockSpec((tm_eff, tn_eff), lambda j, i: (i, j)),
                scratch_shapes=[pltpu.VMEM((k, tn_eff), jnp.bfloat16)],
            ),
            compiler_params=compiler_params,
            cost_estimate=cost,
        )(x2, q_p, s_p, z_p)

    return out[:m, :n].reshape(*lead, n)


# ---------------------------------------------------------------------------
# Quantize / pack helper (JAX mirror of the module's quantize_and_pack_weights)
# ---------------------------------------------------------------------------
def quantize_and_pack_weights(w, group_size, nbit):
    """Mirror of torchao _quantize(..., has_weight_zeros=True, signed=False)
    followed by weight_zeros = -zp * scale, emitting K-major arrays.

    w: (N, K) float -> qvals_km (K, N) u8, scales_km (K//g, N) f32,
                       weight_zeros_km (K//g, N) f32
    """
    qmin, qmax = 0, (1 << nbit) - 1
    n, k = w.shape
    g = w.reshape(-1, group_size)
    vmins = g.min(axis=1)
    vmaxs = g.max(axis=1)
    scales = (vmaxs - vmins) / (qmax - qmin)
    const_grp = scales == 0.0
    safe = jnp.where(const_grp, 1.0, scales)
    zps = qmin - jnp.round(vmins / safe)
    q = jnp.clip(jnp.round(g / safe[:, None]) + zps[:, None], qmin, qmax)
    q = q.reshape(n, k).astype(jnp.uint8)
    weight_zeros = -zps * scales
    # Constant groups (scale == 0) would otherwise dequantize to 0; encode the
    # constant via the zero term (the scale->0 limit of -zp*scale is vmin).
    weight_zeros = jnp.where(const_grp, vmins, weight_zeros)
    scales_km = scales.reshape(n, -1).T.astype(jnp.float32)      # (K//g, N)
    zeros_km = weight_zeros.reshape(n, -1).T.astype(jnp.float32)  # (K//g, N)
    qvals_km = q.T                                                # (K, N)
    # TODO(synk): the MPS pack_weight_op produces an opaque packed buffer; here
    # the "packed" weights are represented as plain K-major uint8 nbit codes.
    return qvals_km, scales_km, zeros_km


if __name__ == "__main__":
    key = jax.random.PRNGKey(0)
    k_x1, k_x2, k_w = jax.random.split(key, 3)

    K, N = 32, 16
    group_size, nbit = 8, 4

    w_fp = jax.random.normal(k_w, (N, K), dtype=jnp.float32)
    qvals_km, scales_km, zeros_km = quantize_and_pack_weights(
        w_fp, group_size, nbit)

    # Pure-JAX reference with the same numerics (bf16 MXU operands, f32 acc).
    w_dq = (qvals_km.astype(jnp.float32)
            * jnp.repeat(scales_km, group_size, axis=0)
            + jnp.repeat(zeros_km, group_size, axis=0))           # (K, N)
    w_bf = w_dq.astype(jnp.bfloat16).astype(jnp.float32)

    def ref_fwd(x):
        x_bf = x.reshape(-1, K).astype(jnp.bfloat16).astype(jnp.float32)
        return (x_bf @ w_bf).reshape(*x.shape[:-1], N)

    # 1) decode-shaped call -> single M tile -> fused fast path
    x1 = jax.random.normal(k_x1, (2, 8, K), dtype=jnp.float32)
    out1 = jax.block_until_ready(
        uintx_weight_only_linear(x1, qvals_km, scales_km, zeros_km, group_size))
    assert out1.shape == (2, 8, N) and out1.dtype == jnp.float32
    assert jnp.allclose(out1, ref_fwd(x1), atol=2e-3, rtol=2e-3)

    # 2) multi-M-tile call (tm=16 -> 2 M tiles) -> cached-dequant path
    x2 = jax.random.normal(k_x2, (4, 8, K), dtype=jnp.float32)
    out2 = jax.block_until_ready(
        uintx_weight_only_linear(x2, qvals_km, scales_km, zeros_km, group_size,
                                 tm=16))
    assert out2.shape == (4, 8, N) and out2.dtype == jnp.float32
    assert jnp.allclose(out2, ref_fwd(x2), atol=2e-3, rtol=2e-3)

    print("KERNEL_OK")
</pallas_src>

<mosaic_0001>
module attributes {stable_mosaic.version = 11 : i64} {
  func.func @_wq_linear_fused_kernel(%arg0: i32, %arg1: i32, %arg2: memref<16x32xbf16, #tpu.memory_space<vmem>>, %arg3: memref<32x128xi8, #tpu.memory_space<vmem>>, %arg4: memref<4x128xf32, #tpu.memory_space<vmem>>, %arg5: memref<4x128xf32, #tpu.memory_space<vmem>>, %arg6: memref<16x128xf32, #tpu.memory_space<vmem>>, %arg7: memref<16x128xf32, #tpu.memory_space<vmem>>) attributes {dimension_semantics = [#tpu.dimension_semantics<parallel>, #tpu.dimension_semantics<arbitrary>], iteration_bounds = array<i64: 1, 1>, scalar_prefetch = 0 : i64, scratch_operands = 1 : i64, tpu.core_type = #tpu.core_type<tc>, window_params = [{transform_indices = @transform_0, window_bounds = array<i64: 16, 32>}, {transform_indices = @transform_1, window_bounds = array<i64: 32, 128>}, {transform_indices = @transform_2, window_bounds = array<i64: 4, 128>}, {transform_indices = @transform_3, window_bounds = array<i64: 4, 128>}, {transform_indices = @transform_4, window_bounds = array<i64: 16, 128>}]} {
    %c0_i32 = arith.constant 0 : i32
    %0 = arith.cmpi eq, %arg1, %c0_i32 : i32
    %1 = arith.extui %0 : i1 to i32
    %c0_i32_0 = arith.constant 0 : i32
    %2 = arith.cmpi ne, %1, %c0_i32_0 : i32
    scf.if %2 {
      %cst_14 = arith.constant 0.000000e+00 : f32
      %24 = vector.broadcast %cst_14 : f32 to vector<16x128xf32>
      %c0_15 = arith.constant 0 : index
      %c0_16 = arith.constant 0 : index
      %25 = vector.load %arg7[%c0_15, %c0_16] : memref<16x128xf32, #tpu.memory_space<vmem>>, vector<16x128xf32>
      tpu.vector_store %arg7[%c0_15, %c0_16], %24 {strides = array<i32>} : memref<16x128xf32, #tpu.memory_space<vmem>>, vector<16x128xf32>,
    } else {
    }
    %c0 = arith.constant 0 : index
    %c0_1 = arith.constant 0 : index
    %3 = vector.load %arg3[%c0, %c0_1] : memref<32x128xi8, #tpu.memory_space<vmem>>, vector<32x128xi8>
    %4 = arith.uitofp %3 : vector<32x128xi8> to vector<32x128xf32>
    %5 = vector.shape_cast %4 : vector<32x128xf32> to vector<4x8x128xf32>
    %c0_2 = arith.constant 0 : index
    %c0_3 = arith.constant 0 : index
    %6 = vector.load %arg4[%c0_2, %c0_3] : memref<4x128xf32, #tpu.memory_space<vmem>>, vector<4x128xf32>
    %7 = vector.shape_cast %6 : vector<4x128xf32> to vector<4x1x128xf32>
    %8 = vector.broadcast %7 : vector<4x1x128xf32> to vector<4x8x128xf32>
    %9 = arith.mulf %5, %8 : vector<4x8x128xf32>
    %c0_4 = arith.constant 0 : index
    %c0_5 = arith.constant 0 : index
    %10 = vector.load %arg5[%c0_4, %c0_5] : memref<4x128xf32, #tpu.memory_space<vmem>>, vector<4x128xf32>
    %11 = vector.shape_cast %10 : vector<4x128xf32> to vector<4x1x128xf32>
    %12 = vector.broadcast %11 : vector<4x1x128xf32> to vector<4x8x128xf32>
    %13 = arith.addf %9, %12 : vector<4x8x128xf32>
    %14 = vector.shape_cast %13 : vector<4x8x128xf32> to vector<32x128xf32>
    %c0_6 = arith.constant 0 : index
    %c0_7 = arith.constant 0 : index
    %15 = vector.load %arg7[%c0_6, %c0_7] : memref<16x128xf32, #tpu.memory_space<vmem>>, vector<16x128xf32>
    %c0_8 = arith.constant 0 : index
    %c0_9 = arith.constant 0 : index
    %16 = vector.load %arg2[%c0_8, %c0_9] : memref<16x32xbf16, #tpu.memory_space<vmem>>, vector<16x32xbf16>
    %17 = arith.truncf %14 : vector<32x128xf32> to vector<32x128xbf16>
    %cst = arith.constant dense<0.000000e+00> : vector<16x128xf32>
    %18 = tpu.matmul %16, %17, %cst {dimension_numbers = #tpu.dot_dimension_numbers<[1], [0], [0], [1], [0, 0, 1, 1], [], []>} : vector<16x32xbf16>, vector<32x128xbf16>, vector<16x128xf32> -> vector<16x128xf32>
    %19 = arith.addf %15, %18 : vector<16x128xf32>
    %c0_10 = arith.constant 0 : index
    %c0_11 = arith.constant 0 : index
    %20 = vector.load %arg7[%c0_10, %c0_11] : memref<16x128xf32, #tpu.memory_space<vmem>>, vector<16x128xf32>
    tpu.vector_store %arg7[%c0_10, %c0_11], %19 {strides = array<i32>} : memref<16x128xf32, #tpu.memory_space<vmem>>, vector<16x128xf32>,
    %c0_i32_12 = arith.constant 0 : i32
    %21 = arith.cmpi eq, %arg1, %c0_i32_12 : i32
    %22 = arith.extui %21 : i1 to i32
    %c0_i32_13 = arith.constant 0 : i32
    %23 = arith.cmpi ne, %22, %c0_i32_13 : i32
    scf.if %23 {
      %c0_14 = arith.constant 0 : index
      %c0_15 = arith.constant 0 : index
      %24 = vector.load %arg7[%c0_14, %c0_15] : memref<16x128xf32, #tpu.memory_space<vmem>>, vector<16x128xf32>
      %c0_16 = arith.constant 0 : index
      %c0_17 = arith.constant 0 : index
      %25 = vector.load %arg6[%c0_16, %c0_17] : memref<16x128xf32, #tpu.memory_space<vmem>>, vector<16x128xf32>
      tpu.vector_store %arg6[%c0_16, %c0_17], %24 {strides = array<i32>} : memref<16x128xf32, #tpu.memory_space<vmem>>, vector<16x128xf32>,
    } else {
    }
    return
  }
  func.func @transform_0(%arg0: i32, %arg1: i32) -> (i32, i32) {
    %c0_i32 = arith.constant 0 : i32
    %c0_i32_0 = arith.constant 0 : i32
    return %c0_i32, %arg1 : i32, i32
  }
  func.func @transform_1(%arg0: i32, %arg1: i32) -> (i32, i32) {
    %c0_i32 = arith.constant 0 : i32
    return %arg1, %arg0 : i32, i32
  }
  func.func @transform_2(%arg0: i32, %arg1: i32) -> (i32, i32) {
    %c0_i32 = arith.constant 0 : i32
    return %arg1, %arg0 : i32, i32
  }
  func.func @transform_3(%arg0: i32, %arg1: i32) -> (i32, i32) {
    %c0_i32 = arith.constant 0 : i32
    return %arg1, %arg0 : i32, i32
  }
  func.func @transform_4(%arg0: i32, %arg1: i32) -> (i32, i32) {
    %c0_i32 = arith.constant 0 : i32
    %c0_i32_0 = arith.constant 0 : i32
    return %c0_i32, %arg0 : i32, i32
  }
}

</mosaic_0001>

<llo_original>
// kernel: tpu_custom_call.1
$region0: #{tpu_custom_call.1}
  #allocation0 [shape = 'u32[]', space=smem, size = 0x4, offset = 0x4, fixed_abs, tag = 'smem constant byte address 0x4 - core index']
  #allocation1 [shape = 'u32[144,128]{1,0:T(1,128)}', space=vmem, size = 0x12000, scoped, tag = 'internal scratch']
  #allocation2 [shape = 'f32[16,128]{1,0:T(8,128)}', space=vmem, size = 0x2000, scoped, tag = 'scratch operand']
  %s0 = inlined_call_operand.hbm [shape: bf16[16,32], index: 0, kind: input, shape index: {}]
  %s1 = inlined_call_operand.hbm [shape: u8[32,128], index: 1, kind: input, shape index: {}]
  %s2 = inlined_call_operand.vmem [shape: f32[4,128], index: 2, kind: input, shape index: {}]
  %s3 = inlined_call_operand.vmem [shape: f32[4,128], index: 3, kind: input, shape index: {}]
  %s4 = inlined_call_operand.hbm [shape: f32[16,128], index: 4, kind: output, shape index: {}]
  %s5 = sld [smem:[#allocation0]]
  $region42: #{tpu_custom_call.1} parent=0
    _
  %s7 = ssub.s32 1, %s5
  %s8 = scalar_select 0, %s7, %s5
  $region1: #{tpu_custom_call.1} parent=0
    #allocation3 [shape = 'u8[4096]{0}', space=vmem, size = 0x1000, scoped, tag = 'input window, operand 0, single buffered']
    #allocation4 [shape = 's32[1]{0}', space=sflag, size = 0x4, scoped, tag = 'scoped memory for tpu_custom_call.1']
    #allocation5 [shape = 's32[1]{0}', space=sflag, size = 0x4, scoped, tag = 'scoped memory for tpu_custom_call.1']
    #allocation6 [shape = 'u8[4096]{0}', space=vmem, size = 0x1000, scoped, tag = 'input window, operand 1, single buffered']
    #allocation7 [shape = 's32[1]{0}', space=sflag, size = 0x4, scoped, tag = 'scoped memory for tpu_custom_call.1']
    #allocation8 [shape = 'u8[8192]{0}', space=vmem, size = 0x2000, scoped, tag = 'output window, operand 0, single buffered']
    %9 = vsyncpa [#allocation4], 0
    %10 = vsyncpa [#allocation7], 0
    %11 = vsyncpa [#allocation5], 0
    // Predicated region
    $region2: #{tpu_custom_call.1} parent=1 // pred_check
      _
    $region3: #{tpu_custom_call.1} parent=1 // pred_check_branch
      %13 = sbr.rel (0) target = $region5
    $region4: #{tpu_custom_call.1} parent=1 // pred_region
      %s15 = ssub.s32 128, 128
      %16 = vsyncadd [#allocation4], %s15
      %s17 = sshll.u32 [#allocation3], 4
      %s18 = int_to_ptr.vmem [resolvable:$true] %s17
      %23 = dma.hbm_to_vmem [thread:$0]  %s0, 128, %s18, [#allocation4], 64, 64, 4
    $region5: #{tpu_custom_call.1} parent=1 // pred_fallthru
      _
    // Predicated region
    $region6: #{tpu_custom_call.1} parent=1 // pred_check
      _
    $region7: #{tpu_custom_call.1} parent=1 // pred_check_branch
      %25 = sbr.rel (0) target = $region9
    $region8: #{tpu_custom_call.1} parent=1 // pred_region
      %s27 = ssub.s32 128, 128
      %28 = vsyncadd [#allocation7], %s27
      %s30 = sshll.u32 [#allocation6], 4
      %s31 = int_to_ptr.vmem [resolvable:$true] %s30
      %33 = dma.hbm_to_vmem [thread:$0]  %s1, 128, %s31, [#allocation7]
    $region9: #{tpu_custom_call.1} parent=1 // pred_fallthru
      _
    // Predicated region
    $region10: #{tpu_custom_call.1} parent=1 // pred_check
      _
    $region11: #{tpu_custom_call.1} parent=1 // pred_check_branch
      %35 = sbr.rel (0) target = $region13
    $region12: #{tpu_custom_call.1} parent=1 // pred_region
      _
    $region13: #{tpu_custom_call.1} parent=1 // pred_fallthru
      _
    // Predicated region
    $region14: #{tpu_custom_call.1} parent=1 // pred_check
      _
    $region15: #{tpu_custom_call.1} parent=1 // pred_check_branch
      %37 = sbr.rel (0) target = $region17
    $region16: #{tpu_custom_call.1} parent=1 // pred_region
      _
    $region17: #{tpu_custom_call.1} parent=1 // pred_fallthru
      _
    // Predicated region
    $region18: #{tpu_custom_call.1} parent=1 // pred_check
      _
    $region19: #{tpu_custom_call.1} parent=1 // pred_check_branch
      %39 = sbr.rel (0) target = $region21
    $region20: #{tpu_custom_call.1} parent=1 // pred_region
      %40 = dma.done [#allocation4], 128
    $region21: #{tpu_custom_call.1} parent=1 // pred_fallthru
      _
    // Predicated region
    $region22: #{tpu_custom_call.1} parent=1 // pred_check
      _
    $region23: #{tpu_custom_call.1} parent=1 // pred_check_branch
      %42 = sbr.rel (0) target = $region25
    $region24: #{tpu_custom_call.1} parent=1 // pred_region
      %43 = dma.done [#allocation7], 128
    $region25: #{tpu_custom_call.1} parent=1 // pred_fallthru
      _
    %p45 = scmp.eq.s32.totalorder 0, 0
    // Predicated region
    $region26: #{tpu_custom_call.1} parent=1 // pred_check
      %p46 = pneg %p45
    $region27: #{tpu_custom_call.1} parent=1 // pred_check_branch
      %48 = sbr.rel (%p46) target = $region29
    $region28: #{tpu_custom_call.1} parent=1 // pred_region
      %49 = vst [vmem:[#allocation2] sm:$0xff] 0.0
      %50 = vst [vmem:[#allocation2 + $0x8] sm:$0xff] 0.0
    $region29: #{tpu_custom_call.1} parent=1 // pred_fallthru
      _
    %v51 = vld [vmem:[#allocation6] sm:$0xff]
    %v52 = vunpack.c.0.s8 %v51
    %v53 = vunpack.c.1.s8 %v51
    %v54 = vunpack.c.2.s8 %v51
    %v55 = vunpack.c.3.s8 %v51
    %v56 = vand.u32 %v52, 255
    %v57 = vand.u32 %v53, 255
    %v58 = vand.u32 %v54, 255
    %v59 = vand.u32 %v55, 255
    %v60 = vcvt.s32.f32 %v56
    %v61 = vcvt.s32.f32 %v57
    %v62 = vcvt.s32.f32 %v58
    %v63 = vcvt.s32.f32 %v59
    %v64 = vld [vmem:[%s2] sm:$0xf]
    %v67 = vunpack.c.l.s4 1966171168
    %v68 = vunpack.c.0.s8 %v67
    %v69 = vlaneseq
    %v70 = vshrl.u32 %v69, 7
    %v71 = vsub.s32 %v68, %v70
    %v72 = vrot.slane %v64, %v71
    %v73 = vcombine.high %v72, %v72
    %v75 = vunpack.c.l.s4 1966171168
    %v76 = vunpack.c.0.s8 %v75
    %v77 = vlaneseq
    %v78 = vshrl.u32 %v77, 7
    %v79 = vsub.s32 %v76, %v78
    %v80 = vrot.slane %v72, %v79
    %v82 = vunpack.c.l.s4 1966171168
    %v83 = vunpack.c.0.s8 %v82
    %v84 = vlaneseq
    %v85 = vshrl.u32 %v84, 7
    %v86 = vsub.s32 %v83, %v85
    %v87 = vrot.slane %v73, %v86
    %v88 = vcombine.high %v80, %v80
    %v89 = vcombine.high %v87, %v87
    %v90 = vlaneseq
    %v91 = vshrl.u32 %v90, 7
    %v92 = vsub.s32 0, %v91
    %v93 = vrot.slane %v80, %v92
    %v94 = vlaneseq
    %v95 = vshrl.u32 %v94, 7
    %v96 = vsub.s32 0, %v95
    %v97 = vrot.slane %v87, %v96
    %v98 = vlaneseq
    %v99 = vshrl.u32 %v98, 7
    %v100 = vsub.s32 0, %v99
    %v101 = vrot.slane %v88, %v100
    %v102 = vlaneseq
    %v103 = vshrl.u32 %v102, 7
    %v104 = vsub.s32 0, %v103
    %v105 = vrot.slane %v89, %v104
    %v110 = vmul.f32 %v60, %v93
    %v111 = vmul.f32 %v61, %v97
    %v112 = vmul.f32 %v62, %v101
    %v113 = vmul.f32 %v63, %v105
    %v114 = vld [vmem:[%s3] sm:$0xf]
    %v117 = vunpack.c.l.s4 1966171168
    %v118 = vunpack.c.0.s8 %v117
    %v119 = vlaneseq
    %v120 = vshrl.u32 %v119, 7
    %v121 = vsub.s32 %v118, %v120
    %v122 = vrot.slane %v114, %v121
    %v123 = vcombine.high %v122, %v122
    %v125 = vunpack.c.l.s4 1966171168
    %v126 = vunpack.c.0.s8 %v125
    %v127 = vlaneseq
    %v128 = vshrl.u32 %v127, 7
    %v129 = vsub.s32 %v126, %v128
    %v130 = vrot.slane %v122, %v129
    %v132 = vunpack.c.l.s4 1966171168
    %v133 = vunpack.c.0.s8 %v132
    %v134 = vlaneseq
    %v135 = vshrl.u32 %v134, 7
    %v136 = vsub.s32 %v133, %v135
    %v137 = vrot.slane %v123, %v136
    %v138 = vcombine.high %v130, %v130
    %v139 = vcombine.high %v137, %v137
    %v140 = vlaneseq
    %v141 = vshrl.u32 %v140, 7
    %v142 = vsub.s32 0, %v141
    %v143 = vrot.slane %v130, %v142
    %v144 = vlaneseq
    %v145 = vshrl.u32 %v144, 7
    %v146 = vsub.s32 0, %v145
    %v147 = vrot.slane %v137, %v146
    %v148 = vlaneseq
    %v149 = vshrl.u32 %v148, 7
    %v150 = vsub.s32 0, %v149
    %v151 = vrot.slane %v138, %v150
    %v152 = vlaneseq
    %v153 = vshrl.u32 %v152, 7
    %v154 = vsub.s32 0, %v153
    %v155 = vrot.slane %v139, %v154
    %v160 = vadd.f32 %v110, %v143
    %v161 = vadd.f32 %v111, %v147
    %v162 = vadd.f32 %v112, %v151
    %v163 = vadd.f32 %v113, %v155
    %v164 = vld [vmem:[#allocation2] sm:$0xff]
    %v165 = vld [vmem:[#allocation2 + $0x8] sm:$0xff]
    %v166 = vld [vmem:[#allocation3] sm:$0xf]
    %v167 = vld [vmem:[#allocation3 + $0x4] sm:$0xf]
    %v168 = vpack.c.bf16 %v161, %v160
    %v169 = vpack.c.bf16 %v163, %v162
    %v172 = vunpack.c.l.b16 %v166
    %v173 = vunpack.c.l.b16 %v167
    %v174 = vpack.c.b16 %v173, %v172
    %vm175 = vcmask 261120
    %v177 = vsel %vm175, %v174, 0
    %179 = vmatprep.subr.bf16.mxu0 0
    %180 = vmatpush1.bf16.msra.mxu0 %v168
    %181 = vmatprep.subr.bf16.mxu0 0
    %182 = vmatpush1.bf16.msra.mxu0 %v169
    %183 = vmatprep.subr.bf16.mxu0 0
    %184 = vmatpush1.bf16.msra.mxu0 0
    %185 = vmatprep.subr.bf16.mxu0 0
    %186 = vmatpush1.bf16.msra.mxu0 0
    %187 = vmatprep.subr.bf16.mxu0 0
    %188 = vmatpush1.bf16.msra.mxu0 0
    %189 = vmatprep.subr.bf16.mxu0 0
    %190 = vmatpush1.bf16.msra.mxu0 0
    %191 = vmatprep.subr.bf16.mxu0 0
    %192 = vmatpush1.bf16.msra.mxu0 0
    %193 = vmatprep.subr.bf16.mxu0 0
    %194 = vmatpush1.bf16.msra.mxu0 0
    %195 = vmatprep.subr.bf16.mxu0 0
    %196 = vmatpush1.bf16.msra.mxu0 0
    %197 = vmatprep.subr.bf16.mxu0 0
    %198 = vmatpush1.bf16.msra.mxu0 0
    %199 = vmatprep.subr.bf16.mxu0 0
    %200 = vmatpush1.bf16.msra.mxu0 0
    %201 = vmatprep.subr.bf16.mxu0 0
    %202 = vmatpush1.bf16.msra.mxu0 0
    %203 = vmatprep.subr.bf16.mxu0 0
    %204 = vmatpush1.bf16.msra.mxu0 0
    %205 = vmatprep.subr.bf16.mxu0 0
    %206 = vmatpush1.bf16.msra.mxu0 0
    %207 = vmatprep.subr.bf16.mxu0 0
    %208 = vmatpush1.bf16.msra.mxu0 0
    %209 = vmatprep.subr.bf16.mxu0 0
    %210 = vmatpush1.bf16.msra.mxu0 0
    %211 = vmatprep.mubr.bf16.mxu0 0
    %212 = vmatmul.mubr.bf16.gmra.mrb[0].mxu0 %v177
    %v213 = vpop.f32.mrb[0].mxu0
    %v214 = vadd.f32 0.0, %v213
    %v215 = vpop.f32.mrb[0].mxu0
    %v216 = vpop.f32.mrb[0].mxu0
    %v217 = vadd.f32 0.0, %v216
    %v218 = vpop.f32.mrb[0].mxu0
    %219 = vdwg.mxu0
    %v220 = vadd.f32 %v164, %v214
    %v221 = vadd.f32 %v165, %v217
    %222 = vst [vmem:[#allocation2] sm:$0xff] %v220
    %223 = vst [vmem:[#allocation2 + $0x8] sm:$0xff] %v221
    // Predicated region
    $region30: #{tpu_custom_call.1} parent=1 // pred_check
      %p224 = pneg %p45
    $region31: #{tpu_custom_call.1} parent=1 // pred_check_branch
      %226 = sbr.rel (%p224) target = $region33
    $region32: #{tpu_custom_call.1} parent=1 // pred_region
      %v227 = vld [vmem:[#allocation2] sm:$0xff]
      %v228 = vld [vmem:[#allocation2 + $0x8] sm:$0xff]
      %229 = vst [vmem:[#allocation8] sm:$0xff] %v227
      %230 = vst [vmem:[#allocation8 + $0x8] sm:$0xff] %v228
    $region33: #{tpu_custom_call.1} parent=1 // pred_fallthru
      _
    // Predicated region
    $region34: #{tpu_custom_call.1} parent=1 // pred_check
      _
    $region35: #{tpu_custom_call.1} parent=1 // pred_check_branch
      %232 = sbr.rel (0) target = $region37
    $region36: #{tpu_custom_call.1} parent=1 // pred_region
      %s234 = ssub.s32 256, 256
      %235 = vsyncadd [#allocation5], %s234
      %s236 = sshll.u32 [#allocation8], 4
      %s237 = int_to_ptr.vmem [resolvable:$true] %s236
      %242 = dma.vmem_to_hbm [thread:$0]  %s237, 256, %s4, [#allocation5], 128, 128, 8
    $region37: #{tpu_custom_call.1} parent=1 // pred_fallthru
      _
    // Predicated region
    $region38: #{tpu_custom_call.1} parent=1 // pred_check
      _
    $region39: #{tpu_custom_call.1} parent=1 // pred_check_branch
      %244 = sbr.rel (0) target = $region41
    $region40: #{tpu_custom_call.1} parent=1 // pred_region
      %245 = dma.done [#allocation5], 256
    $region41: #{tpu_custom_call.1} parent=1 // pred_fallthru
      _
    %246 = vsyncpa [#allocation4], 1
    %247 = vsyncpa [#allocation7], 1
    %248 = vsyncpa [#allocation5], 1

</llo_original>
